<compile_context>
chip_gen: v5e
topology: v5e:2x2
jax: 0.10.0
libtpu: 0.0.40
codegen_flags: <defaults>
</compile_context>

<pallas_src>
import math

import jax
import jax.numpy as jnp
from jax.experimental import pallas as pl
from jax.experimental.pallas import tpu as pltpu


def _softplus_stable(x):
    # Numerically-stable softplus using only ops that lower cleanly in Mosaic.
    return jnp.maximum(x, 0.0) + jnp.log(1.0 + jnp.exp(-jnp.abs(x)))


def _hs_dense_kernel_bias(x_ref, z_ref, w_ref, b_ref, y_ref):
    # z gate: softplus(qz_mean), tiny (1, in) — recompute per tile (negligible).
    z = _softplus_stable(z_ref[...].astype(jnp.float32))          # (1, In)
    xin = x_ref[...].astype(jnp.float32) * z                      # (TB, In)
    y = jnp.dot(xin, w_ref[...].astype(jnp.float32),
                preferred_element_type=jnp.float32)               # (TB, OutP)
    y = y + b_ref[...].astype(jnp.float32)                        # (1, OutP) bcast
    y_ref[...] = y.astype(y_ref.dtype)


def _hs_dense_kernel_nobias(x_ref, z_ref, w_ref, y_ref):
    z = _softplus_stable(z_ref[...].astype(jnp.float32))
    xin = x_ref[...].astype(jnp.float32) * z
    y = jnp.dot(xin, w_ref[...].astype(jnp.float32),
                preferred_element_type=jnp.float32)
    y_ref[...] = y.astype(y_ref.dtype)


def hs_dense(x, mean_w, qz_mean, mean_bias=None, *, block_b=256):
    """Eval-mode HSDense forward: (x * softplus(qz_mean)) @ mean_w [+ bias]."""
    B, In = x.shape
    In_w, Out = mean_w.shape
    assert In == In_w, "in_features mismatch"
    use_bias = mean_bias is not None

    # ---- lane-dense output: pad the out dimension up to a multiple of 128 ----
    out_p = ((Out + 127) // 128) * 128
    if out_p != Out:
        w_p = jnp.zeros((In, out_p), mean_w.dtype).at[:, :Out].set(mean_w)
    else:
        w_p = mean_w
    if use_bias:
        if out_p != Out:
            b_p = jnp.zeros((1, out_p), mean_bias.dtype).at[0, :Out].set(mean_bias)
        else:
            b_p = mean_bias.reshape(1, Out)

    # ---- batch tiling: sublane-aligned tiles, padded so the grid is exact ----
    tb = min(block_b, max(8, ((B + 7) // 8) * 8))
    b_total = ((B + tb - 1) // tb) * tb
    if b_total != B:
        x_in = jnp.zeros((b_total, In), x.dtype).at[:B].set(x)
    else:
        x_in = x

    z2 = qz_mean.reshape(1, In)

    in_specs = [
        pl.BlockSpec((tb, In), lambda i: (i, 0)),       # x tile (pipelined)
        pl.BlockSpec((1, In), lambda i: (0, 0)),        # qz_mean (resident)
        pl.BlockSpec((In, out_p), lambda i: (0, 0)),    # mean_w (resident)
    ]
    args = [x_in, z2, w_p]
    if use_bias:
        in_specs.append(pl.BlockSpec((1, out_p), lambda i: (0, 0)))
        args.append(b_p)
        kernel = _hs_dense_kernel_bias
    else:
        kernel = _hs_dense_kernel_nobias

    y = pl.pallas_call(
        kernel,
        out_shape=jax.ShapeDtypeStruct((b_total, out_p), x.dtype),
        grid=(b_total // tb,),
        in_specs=in_specs,
        out_specs=pl.BlockSpec((tb, out_p), lambda i: (i, 0)),
        compiler_params=pltpu.CompilerParams(
            dimension_semantics=("parallel",)),
    )(*args)

    return y[:B, :Out]


def _reference(x, mean_w, qz_mean, mean_bias):
    """Pure-JAX replica of HSDense.forward in eval mode."""
    z = jax.nn.softplus(qz_mean).reshape(1, -1)
    xin = x * z
    out = xin @ mean_w
    if mean_bias is not None:
        out = out + mean_bias.reshape(1, -1)
    return out


if __name__ == "__main__":
    # HSDense(in_features=32, out_features=16, bias=True), eval-mode forward.
    in_features, out_features, batch = 32, 16, 8

    key = jax.random.PRNGKey(0)
    k_w, k_z, k_b, k_x = jax.random.split(key, 4)

    # Deterministic replica of reset_parameters():
    #   mean_w   ~ kaiming_normal_(fan_out)  -> std = sqrt(2 / out_features)
    #   qz_mean  ~ N(log(e - 1), 0.001)
    #   mean_bias~ N(0, 0.01)
    mean_w = jax.random.normal(k_w, (in_features, out_features),
                               dtype=jnp.float32) * math.sqrt(2.0 / out_features)
    qz_mean = (math.log(math.exp(1.0) - 1.0)
               + 0.001 * jax.random.normal(k_z, (in_features,), dtype=jnp.float32))
    mean_bias = 0.01 * jax.random.normal(k_b, (out_features,), dtype=jnp.float32)
    x = jax.random.normal(k_x, (batch, in_features), dtype=jnp.float32)

    y = hs_dense(x, mean_w, qz_mean, mean_bias)
    y = jax.block_until_ready(y)

    y_ref = _reference(x, mean_w, qz_mean, mean_bias)
    assert y.shape == (batch, out_features)
    assert jnp.allclose(y, y_ref, atol=1e-4, rtol=1e-4), \
        f"max abs err {jnp.max(jnp.abs(y - y_ref))}"

    print("KERNEL_OK")
</pallas_src>

<mosaic_0001>
module attributes {stable_mosaic.version = 11 : i64} {
  func.func @_hs_dense_kernel_bias(%arg0: i32, %arg1: memref<8x32xf32, #tpu.memory_space<vmem>>, %arg2: memref<1x32xf32, #tpu.memory_space<vmem>>, %arg3: memref<32x128xf32, #tpu.memory_space<vmem>>, %arg4: memref<1x128xf32, #tpu.memory_space<vmem>>, %arg5: memref<8x128xf32, #tpu.memory_space<vmem>>) attributes {dimension_semantics = [#tpu.dimension_semantics<parallel>], iteration_bounds = array<i64: 1>, scalar_prefetch = 0 : i64, scratch_operands = 0 : i64, tpu.core_type = #tpu.core_type<tc>, window_params = [{transform_indices = @transform_0, window_bounds = array<i64: 8, 32>}, {pipeline_mode = #tpu.pipeline_mode<synchronous>, transform_indices = @transform_1, window_bounds = array<i64: 1, 32>}, {pipeline_mode = #tpu.pipeline_mode<synchronous>, transform_indices = @transform_2, window_bounds = array<i64: 32, 128>}, {pipeline_mode = #tpu.pipeline_mode<synchronous>, transform_indices = @transform_3, window_bounds = array<i64: 1, 128>}, {transform_indices = @transform_4, window_bounds = array<i64: 8, 128>}]} {
    %c0 = arith.constant 0 : index
    %c0_0 = arith.constant 0 : index
    %0 = vector.load %arg2[%c0, %c0_0] : memref<1x32xf32, #tpu.memory_space<vmem>>, vector<1x32xf32>
    %cst = arith.constant 0.000000e+00 : f32
    %1 = vector.broadcast %cst : f32 to vector<1x32xf32>
    %2 = arith.maximumf %0, %1 : vector<1x32xf32>
    %3 = math.absf %0 : vector<1x32xf32>
    %cst_1 = arith.constant 0.000000e+00 : f32
    %4 = vector.broadcast %cst_1 : f32 to vector<1x32xf32>
    %5 = arith.subf %4, %3 : vector<1x32xf32>
    %6 = math.exp %5 : vector<1x32xf32>
    %cst_2 = arith.constant 1.000000e+00 : f32
    %7 = vector.broadcast %cst_2 : f32 to vector<1x32xf32>
    %8 = arith.addf %7, %6 : vector<1x32xf32>
    %9 = math.log %8 : vector<1x32xf32>
    %10 = arith.addf %2, %9 : vector<1x32xf32>
    %c0_3 = arith.constant 0 : index
    %c0_4 = arith.constant 0 : index
    %11 = vector.load %arg1[%c0_3, %c0_4] : memref<8x32xf32, #tpu.memory_space<vmem>>, vector<8x32xf32>
    %12 = vector.broadcast %10 : vector<1x32xf32> to vector<8x32xf32>
    %13 = arith.mulf %11, %12 : vector<8x32xf32>
    %c0_5 = arith.constant 0 : index
    %c0_6 = arith.constant 0 : index
    %14 = vector.load %arg3[%c0_5, %c0_6] : memref<32x128xf32, #tpu.memory_space<vmem>>, vector<32x128xf32>
    %cst_7 = arith.constant dense<0.000000e+00> : vector<8x128xf32>
    %15 = tpu.matmul %13, %14, %cst_7 {dimension_numbers = #tpu.dot_dimension_numbers<[1], [0], [0], [1], [0, 0, 1, 1], [], []>} : vector<8x32xf32>, vector<32x128xf32>, vector<8x128xf32> -> vector<8x128xf32>
    %c0_8 = arith.constant 0 : index
    %c0_9 = arith.constant 0 : index
    %16 = vector.load %arg4[%c0_8, %c0_9] : memref<1x128xf32, #tpu.memory_space<vmem>>, vector<1x128xf32>
    %17 = vector.broadcast %16 : vector<1x128xf32> to vector<8x128xf32>
    %18 = arith.addf %15, %17 : vector<8x128xf32>
    %c0_10 = arith.constant 0 : index
    %c0_11 = arith.constant 0 : index
    %19 = vector.load %arg5[%c0_10, %c0_11] : memref<8x128xf32, #tpu.memory_space<vmem>>, vector<8x128xf32>
    tpu.vector_store %arg5[%c0_10, %c0_11], %18 {strides = array<i32>} : memref<8x128xf32, #tpu.memory_space<vmem>>, vector<8x128xf32>,
    return
  }
  func.func @transform_0(%arg0: i32) -> (i32, i32) {
    %c0_i32 = arith.constant 0 : i32
    %c0_i32_0 = arith.constant 0 : i32
    return %arg0, %c0_i32 : i32, i32
  }
  func.func @transform_1(%arg0: i32) -> (i32, i32) {
    %c0_i32 = arith.constant 0 : i32
    %c0_i32_0 = arith.constant 0 : i32
    %c0_i32_1 = arith.constant 0 : i32
    return %c0_i32, %c0_i32_0 : i32, i32
  }
  func.func @transform_2(%arg0: i32) -> (i32, i32) {
    %c0_i32 = arith.constant 0 : i32
    %c0_i32_0 = arith.constant 0 : i32
    %c0_i32_1 = arith.constant 0 : i32
    return %c0_i32, %c0_i32_0 : i32, i32
  }
  func.func @transform_3(%arg0: i32) -> (i32, i32) {
    %c0_i32 = arith.constant 0 : i32
    %c0_i32_0 = arith.constant 0 : i32
    %c0_i32_1 = arith.constant 0 : i32
    return %c0_i32, %c0_i32_0 : i32, i32
  }
  func.func @transform_4(%arg0: i32) -> (i32, i32) {
    %c0_i32 = arith.constant 0 : i32
    %c0_i32_0 = arith.constant 0 : i32
    return %arg0, %c0_i32 : i32, i32
  }
}

</mosaic_0001>

<llo_original>
// kernel: tpu_custom_call.1
$region0: #{tpu_custom_call.1}
  #allocation0 [shape = 'u32[]', space=smem, size = 0x4, offset = 0x4, fixed_abs, tag = 'smem constant byte address 0x4 - core index']
  #allocation1 [shape = 'u32[72,128]{1,0:T(1,128)}', space=vmem, size = 0x9000, scoped, tag = 'internal scratch']
  %s0 = inlined_call_operand.hbm [shape: f32[8,32], index: 0, kind: input, shape index: {}]
  %s1 = inlined_call_operand.hbm [shape: f32[1,32], index: 1, kind: input, shape index: {}]
  %s2 = inlined_call_operand.hbm [shape: f32[32,128], index: 2, kind: input, shape index: {}]
  %s3 = inlined_call_operand.vmem [shape: f32[1,128], index: 3, kind: input, shape index: {}]
  %s4 = inlined_call_operand.hbm [shape: f32[8,128], index: 4, kind: output, shape index: {}]
  %s5 = sld [smem:[#allocation0]]
  $region38: #{tpu_custom_call.1} parent=0
    _
  %s7 = ssub.s32 1, %s5
  %s8 = scalar_select 0, %s7, %s5
  $region1: #{tpu_custom_call.1} parent=0
    #allocation2 [shape = 'u8[4096]{0}', space=vmem, size = 0x1000, scoped, tag = 'input window, operand 0, single buffered']
    #allocation3 [shape = 's32[1]{0}', space=sflag, size = 0x4, scoped, tag = 'scoped memory for tpu_custom_call.1']
    #allocation4 [shape = 's32[1]{0}', space=sflag, size = 0x4, scoped, tag = 'scoped memory for tpu_custom_call.1']
    #allocation5 [shape = 'u8[512]{0}', space=vmem, size = 0x400, scoped, tag = 'input window, operand 1, single buffered']
    #allocation6 [shape = 's32[1]{0}', space=sflag, size = 0x4, scoped, tag = 'scoped memory for tpu_custom_call.1']
    #allocation7 [shape = 'u8[16384]{0}', space=vmem, size = 0x4000, scoped, tag = 'input window, operand 2, single buffered']
    #allocation8 [shape = 'u8[4096]{0}', space=vmem, size = 0x1000, scoped, tag = 'output window, operand 0, single buffered']
    %9 = vsyncpa [#allocation3], 0
    %10 = vsyncpa [#allocation6], 0
    %11 = vsyncpa [#allocation4], 0
    // Predicated region
    $region2: #{tpu_custom_call.1} parent=1 // pred_check
      _
    $region3: #{tpu_custom_call.1} parent=1 // pred_check_branch
      %13 = sbr.rel (0) target = $region5
    $region4: #{tpu_custom_call.1} parent=1 // pred_region
      %15 = vsyncadd [#allocation3], 0
      %s17 = sshll.u32 %s0, 4
      %s18 = int_to_ptr.hbm [resolvable:$true] %s17
      %s19 = sshll.u32 [#allocation2], 4
      %s20 = int_to_ptr.vmem [resolvable:$true] %s19
      %22 = dma.hbm_to_vmem [thread:$0]  %s18, 128, %s20, [#allocation3]
    $region5: #{tpu_custom_call.1} parent=1 // pred_fallthru
      _
    // Predicated region
    $region6: #{tpu_custom_call.1} parent=1 // pred_check
      _
    $region7: #{tpu_custom_call.1} parent=1 // pred_check_branch
      %24 = sbr.rel (0) target = $region9
    $region8: #{tpu_custom_call.1} parent=1 // pred_region
      %26 = vsyncadd [#allocation6], 0
      %s28 = sshll.u32 %s1, 4
      %s29 = int_to_ptr.hbm [resolvable:$true] %s28
      %s30 = sshll.u32 [#allocation5], 4
      %s31 = int_to_ptr.vmem [resolvable:$true] %s30
      %33 = dma.hbm_to_vmem [thread:$0]  %s29, 16, %s31, [#allocation6]
    $region9: #{tpu_custom_call.1} parent=1 // pred_fallthru
      _
    // Predicated region
    $region10: #{tpu_custom_call.1} parent=1 // pred_check
      _
    $region11: #{tpu_custom_call.1} parent=1 // pred_check_branch
      %35 = sbr.rel (0) target = $region13
    $region12: #{tpu_custom_call.1} parent=1 // pred_region
      %37 = vsyncadd [#allocation6], 0
      %s38 = sshll.u32 %s2, 4
      %s39 = int_to_ptr.hbm [resolvable:$true] %s38
      %s40 = sshll.u32 [#allocation7], 4
      %s41 = int_to_ptr.vmem [resolvable:$true] %s40
      %46 = dma.hbm_to_vmem [thread:$0]  %s39, 512, %s41, [#allocation6], 128, 128, 8
    $region13: #{tpu_custom_call.1} parent=1 // pred_fallthru
      _
    // Predicated region
    $region14: #{tpu_custom_call.1} parent=1 // pred_check
      _
    $region15: #{tpu_custom_call.1} parent=1 // pred_check_branch
      %48 = sbr.rel (0) target = $region17
    $region16: #{tpu_custom_call.1} parent=1 // pred_region
      _
    $region17: #{tpu_custom_call.1} parent=1 // pred_fallthru
      _
    // Predicated region
    $region18: #{tpu_custom_call.1} parent=1 // pred_check
      _
    $region19: #{tpu_custom_call.1} parent=1 // pred_check_branch
      %50 = sbr.rel (0) target = $region21
    $region20: #{tpu_custom_call.1} parent=1 // pred_region
      %52 = dma.done [#allocation3], 128
    $region21: #{tpu_custom_call.1} parent=1 // pred_fallthru
      _
    // Predicated region
    $region22: #{tpu_custom_call.1} parent=1 // pred_check
      _
    $region23: #{tpu_custom_call.1} parent=1 // pred_check_branch
      %54 = sbr.rel (0) target = $region25
    $region24: #{tpu_custom_call.1} parent=1 // pred_region
      %56 = dma.done [#allocation6], 16
    $region25: #{tpu_custom_call.1} parent=1 // pred_fallthru
      _
    // Predicated region
    $region26: #{tpu_custom_call.1} parent=1 // pred_check
      _
    $region27: #{tpu_custom_call.1} parent=1 // pred_check_branch
      %58 = sbr.rel (0) target = $region29
    $region28: #{tpu_custom_call.1} parent=1 // pred_region
      %60 = dma.done [#allocation6], 512
    $region29: #{tpu_custom_call.1} parent=1 // pred_fallthru
      _
    %v61 = vld [vmem:[#allocation5] sm:$0x1]
    %v62 = vmax.f32 %v61, 0.0
    %v63 = vand.u32 2147483647, %v61
    %v64 = vsub.f32 0.0, %v63
    %v65 = vmul.f32 %v64, 1.442695
    %v66 = vpow.pop %v65
    %v67 = vadd.f32 %v66, 1.0
    %v68 = vlog2.pop %v67
    %v69 = vmul.f32 %v68, 0.6931472
    %v70 = vadd.f32 %v62, %v69
    %v71 = vld [vmem:[#allocation2] sm:$0xff]
    %v73 = vperm.slane %v70, 0
    %v75 = vmul.f32 %v71, %v73
    %v76 = vld [vmem:[#allocation7] sm:$0xff]
    %v77 = vld [vmem:[#allocation7 + $0x8] sm:$0xff]
    %v78 = vld [vmem:[#allocation7 + $0x10] sm:$0xff]
    %v79 = vld [vmem:[#allocation7 + $0x18] sm:$0xff]
    %v80 = vld [vmem:[%s3] sm:$0x1]
    %v82 = vperm.slane %v80, 0
    %vm84 = vcmask 261120
    %v86 = vsel %vm84, %v75, 0
    %88 = vmatpush.msra.mxu0 0.0
    %89 = vmatpush.msra.mxu0 0.0
    %90 = vmatpush.msra.mxu0 0.0
    %91 = vmatpush.msra.mxu0 0.0
    %92 = vmatpush.msra.mxu0 0.0
    %93 = vmatpush.msra.mxu0 0.0
    %94 = vmatpush.msra.mxu0 0.0
    %95 = vmatpush.msra.mxu0 0.0
    %96 = vmatpush.msra.mxu0 0.0
    %97 = vmatpush.msra.mxu0 0.0
    %98 = vmatpush.msra.mxu0 0.0
    %99 = vmatpush.msra.mxu0 0.0
    %100 = vmatpush.msra.mxu0 %v79
    %101 = vmatpush.msra.mxu0 %v78
    %102 = vmatpush.msra.mxu0 %v77
    %103 = vmatpush.msra.mxu0 %v76
    %104 = vmatmul.f32.gmra.mxu0 %v86
    %v105 = vpop.f32.mrf.mxu0
    %v106 = vadd.f32 %v82, %v105
    %107 = vdwg.mxu0
    %108 = vst [vmem:[#allocation8] sm:$0xff] %v106
    // Predicated region
    $region30: #{tpu_custom_call.1} parent=1 // pred_check
      _
    $region31: #{tpu_custom_call.1} parent=1 // pred_check_branch
      %110 = sbr.rel (0) target = $region33
    $region32: #{tpu_custom_call.1} parent=1 // pred_region
      %112 = vsyncadd [#allocation4], 0
      %s114 = sshll.u32 [#allocation8], 4
      %s115 = int_to_ptr.vmem [resolvable:$true] %s114
      %s116 = sshll.u32 %s4, 4
      %s117 = int_to_ptr.hbm [resolvable:$true] %s116
      %119 = dma.vmem_to_hbm [thread:$0]  %s115, 128, %s117, [#allocation4]
    $region33: #{tpu_custom_call.1} parent=1 // pred_fallthru
      _
    // Predicated region
    $region34: #{tpu_custom_call.1} parent=1 // pred_check
      _
    $region35: #{tpu_custom_call.1} parent=1 // pred_check_branch
      %121 = sbr.rel (0) target = $region37
    $region36: #{tpu_custom_call.1} parent=1 // pred_region
      %123 = dma.done [#allocation4], 128
    $region37: #{tpu_custom_call.1} parent=1 // pred_fallthru
      _
    %124 = vsyncpa [#allocation3], 1
    %125 = vsyncpa [#allocation6], 1
    %126 = vsyncpa [#allocation4], 1

</llo_original>
